<compile_context>
chip_gen: v7x
topology: tpu7x:2x2x1
jax: 0.10.0
libtpu: 0.0.40
codegen_flags: <defaults>
</compile_context>

<pallas_src>
import jax
import jax.numpy as jnp
from jax import lax
from jax.experimental import pallas as pl
from jax.experimental.pallas import tpu as pltpu


def _round_up(a, m):
    return ((a + m - 1) // m) * m


def _derive_widths(Qo, M):
    """Frame / window widths for an output tile of Qo flat pixels (halo = M each side)."""
    Qe = _round_up(Qo + 2 * M, 128)   # gate / gated-x frame: output tile + conv-2 halo
    Lt = _round_up(Qe + 2 * M, 128)   # input window:         frame       + gate-conv halo
    return Qe, Lt


def _vmem_estimate(inC, outC, KK, Qo, M, mxu_bytes):
    """Rough per-grid-step VMEM upper bound (bytes) used for tile sizing."""
    Qe, Lt = _derive_widths(Qo, M)
    f32 = 4
    blk = 2 * inC * Lt * f32                                  # input window (2x buffered)
    blk += 2 * outC * Qo * f32                                # output tile  (2x buffered)
    blk += 2 * (inC + outC) * (KK * inC * mxu_bytes + f32)    # weights + biases
    scr = KK * inC * (Qe + Qo) * mxu_bytes                    # stacked-tap scratch buffers
    tmp = 3 * inC * Qe * f32 + inC * Qe * mxu_bytes + outC * Qo * f32   # gate, g, xg, acc
    return blk + scr + tmp


def _make_gated_add_kernel(inC, outC, K, Wp, M, Qe, Qo, mxu_dtype, approx_sigmoid):
    KK = K * K
    # Flat-pixel offset of tap (kh, kw); order matches the (kh, kw, cin) column order of
    # the folded weight matrices built in the wrapper.
    starts = [kh * Wp + kw for kh in range(K) for kw in range(K)]

    def kernel(x_ref, wg_ref, bg_ref, wc_ref, bc_ref, o_ref, rg_ref, rc_ref):
        # ---- gate conv: stack the KK shifted input slices into a VMEM scratch
        #      (VMEM-only im2col) and do ONE wide-contraction MXU matmul.        ----
        for k, s in enumerate(starts):
            rg_ref[k * inC:(k + 1) * inC, :] = \
                x_ref[0, 0, :, s:s + Qe].astype(mxu_dtype)
        gate = jnp.dot(wg_ref[...], rg_ref[...],
                       preferred_element_type=jnp.float32)        # (inC, Qe) f32
        gate = gate + bg_ref[...]                                  # single hoisted bias add
        z = 1.0 + jnp.exp(-gate)                                   # exp on EUP
        if approx_sigmoid:
            g = pl.reciprocal(z, approx=True)                      # EUP vrcp, frees VALU
        else:
            g = 1.0 / z                                            # exact path

        # ---- gating (f32 elementwise): xg = x * sigmoid(gate(x)) on the frame ----
        xg = (x_ref[0, 0, :, M:M + Qe] * g).astype(mxu_dtype)      # (inC, Qe)

        # ---- output conv (chunk-2 halves-sum folded into weight) + bias + ReLU6 ----
        for k, s in enumerate(starts):
            rc_ref[k * inC:(k + 1) * inC, :] = xg[:, s:s + Qo]
        acc = jnp.dot(wc_ref[...], rc_ref[...],
                      preferred_element_type=jnp.float32)          # (outC, Qo) f32
        acc = acc + bc_ref[...]
        o_ref[0] = jnp.minimum(jnp.maximum(acc, 0.0), 6.0).astype(o_ref.dtype)

    return kernel


def gated_add(x, wg, bg, wc, bc, K, *, mxu_dtype=jnp.bfloat16):
    """GatedAdd forward.  x: (B, inC, H, W) NCHW -> (B, inC//2, H, W).

    Call under jax.jit so the single pad / halo-window gather and the final crop fuse.
    """
    B, inC, H, W = x.shape
    assert inC % 2 == 0
    outC = inC // 2
    assert wg.shape == (inC, inC, K, K)
    assert wc.shape == (outC, outC, K, K)
    KK = K * K
    pad = K // 2
    Hp, Wp = H + 2 * pad, W + 2 * pad
    Q0 = Hp * Wp                       # padded-flat spatial length
    M = pad * Wp + pad                 # max |flat shift| of a KxK tap
    mxu_bytes = jnp.dtype(mxu_dtype).itemsize

    # ---- spatial tile size: largest lane-dense tile fitting a conservative VMEM budget
    #      (32 MiB keeps headroom under v7x's 64 MiB; v5e/v6e have 128 MiB). ----
    Qfull = _round_up(Q0, 128)
    budget = 32 * 1024 * 1024
    Qo = 128
    for cand in (4096, 2048, 1024, 512, 256, 128):
        q = min(cand, Qfull)
        if _vmem_estimate(inC, outC, KK, q, M, mxu_bytes) <= budget:
            Qo = q
            break
    Qe, Lt = _derive_widths(Qo, M)
    nT = -(-Q0 // Qo)                  # number of spatial tiles
    Lext = (nT - 1) * Qo + Lt          # slab length incl. halo margins

    # ---- single fused pad (spatial zero-pad + flat halo margins) + halo windows.
    #      Window t covers padded-flat pixels [t*Qo - 2M, t*Qo - 2M + Lt). ----
    xp = jnp.pad(x, ((0, 0), (0, 0), (pad, pad), (pad, pad)))
    x_ext = jnp.pad(xp.reshape(B, inC, Q0),
                    ((0, 0), (0, 0), (2 * M, Lext - 2 * M - Q0)))
    x_tiles = jnp.stack([x_ext[:, :, t * Qo:t * Qo + Lt] for t in range(nT)],
                        axis=1)                                    # (B, nT, inC, Lt)

    # ---- folded, tap-major weights (bf16 by default for native MXU rate) ----
    wg_f = jnp.transpose(wg, (0, 2, 3, 1)).reshape(inC, KK * inC).astype(mxu_dtype)
    wc_ext = jnp.concatenate([wc, wc], axis=1)                     # fold x1 + x2 into weight
    wc_f = jnp.transpose(wc_ext, (0, 2, 3, 1)).reshape(outC, KK * inC).astype(mxu_dtype)
    bg_f = bg.reshape(inC, 1).astype(jnp.float32)
    bc_f = bc.reshape(outC, 1).astype(jnp.float32)

    approx_sigmoid = jnp.dtype(mxu_dtype) == jnp.dtype(jnp.bfloat16)
    kernel = _make_gated_add_kernel(inC, outC, K, Wp, M, Qe, Qo, mxu_dtype, approx_sigmoid)

    est = _vmem_estimate(inC, outC, KK, Qo, M, mxu_bytes)
    vmem_limit = None if est <= 12 * 1024 * 1024 else \
        int(min(est * 5 // 4 + (4 << 20), 48 * 1024 * 1024))

    out_flat = pl.pallas_call(
        kernel,
        out_shape=jax.ShapeDtypeStruct((B, outC, nT * Qo), x.dtype),
        grid=(B, nT),
        in_specs=[
            pl.BlockSpec((1, 1, inC, Lt), lambda b, t: (b, t, 0, 0)),   # halo'd input window
            pl.BlockSpec((inC, KK * inC), lambda b, t: (0, 0)),         # gate-conv weight
            pl.BlockSpec((inC, 1), lambda b, t: (0, 0)),                # gate-conv bias
            pl.BlockSpec((outC, KK * inC), lambda b, t: (0, 0)),        # folded out-conv weight
            pl.BlockSpec((outC, 1), lambda b, t: (0, 0)),               # out-conv bias
        ],
        out_specs=pl.BlockSpec((1, outC, Qo), lambda b, t: (b, 0, t)),  # lane-dense output
        scratch_shapes=[
            pltpu.VMEM((KK * inC, Qe), mxu_dtype),   # stacked taps for the gate conv
            pltpu.VMEM((KK * inC, Qo), mxu_dtype),   # stacked taps for the output conv
        ],
        compiler_params=pltpu.CompilerParams(
            dimension_semantics=("parallel", "parallel"),
            vmem_limit_bytes=vmem_limit),
    )(x_tiles, wg_f, bg_f, wc_f, bc_f)

    # epilogue (fused under jit): drop lane-padding tail + spatial zero-pad border
    out = out_flat[:, :, :Q0].reshape(B, outC, Hp, Wp)
    return out[:, :, pad:pad + H, pad:pad + W]


# ----------------------- pure-JAX reference (for checking) -----------------------
def gated_add_reference(x, wg, bg, wc, bc, K):
    pad = K // 2
    gate_pre = lax.conv_general_dilated(
        x, wg, window_strides=(1, 1), padding=[(pad, pad), (pad, pad)],
        dimension_numbers=('NCHW', 'OIHW', 'NCHW'),
        precision=lax.Precision.HIGHEST) + bg[None, :, None, None]
    g = jax.nn.sigmoid(gate_pre)
    xg = x * g
    C1 = x.shape[1] // 2
    s = xg[:, :C1] + xg[:, C1:]
    out = lax.conv_general_dilated(
        s, wc, window_strides=(1, 1), padding=[(pad, pad), (pad, pad)],
        dimension_numbers=('NCHW', 'OIHW', 'NCHW'),
        precision=lax.Precision.HIGHEST) + bc[None, :, None, None]
    return jnp.clip(out, 0.0, 6.0)        # ReLU6 (ConvLayer default activation)


if __name__ == "__main__":
    B, inC, H, W = 2, 4, 16, 16
    K = 3
    outC = inC // 2                        # chunk-2 + add requires outchannels == inchannels // 2
    KK = K * K

    key = jax.random.PRNGKey(0)
    kx, k1, k2, k3, k4 = jax.random.split(key, 5)
    x = jax.random.normal(kx, (B, inC, H, W), jnp.float32)
    wg = jax.random.normal(k1, (inC, inC, K, K), jnp.float32) / (inC * KK) ** 0.5
    bg = 0.1 * jax.random.normal(k2, (inC,), jnp.float32)
    wc = jax.random.normal(k3, (outC, outC, K, K), jnp.float32) / (outC * KK) ** 0.5
    bc = 0.1 * jax.random.normal(k4, (outC,), jnp.float32)

    ref = gated_add_reference(x, wg, bg, wc, bc, K)

    # Fast path: bf16 MXU operands + approx-reciprocal sigmoid (f32 accumulate /
    # elementwise).  Tolerance reflects bf16 operand rounding.
    run_fast = jax.jit(lambda *a: gated_add(*a, K=K))
    out = jax.block_until_ready(run_fast(x, wg, bg, wc, bc))
    assert out.shape == (B, outC, H, W)
    err_fast = float(jnp.max(jnp.abs(out - ref)))
    assert jnp.allclose(out, ref, atol=5e-2, rtol=5e-2), f"bf16 path max|err|={err_fast}"

    # Precise path: f32 MXU operands + exact sigmoid — tight structural-correctness check
    # of the tiling / halo / weight-folding logic.
    run_f32 = jax.jit(lambda *a: gated_add(*a, K=K, mxu_dtype=jnp.float32))
    out32 = jax.block_until_ready(run_f32(x, wg, bg, wc, bc))
    err_f32 = float(jnp.max(jnp.abs(out32 - ref)))
    assert jnp.allclose(out32, ref, atol=1e-3, rtol=1e-3), f"f32 path max|err|={err_f32}"

    print("KERNEL_OK")
</pallas_src>

<mosaic_0001>
module attributes {stable_mosaic.version = 11 : i64} {
  func.func @kernel(%arg0: i32, %arg1: i32, %arg2: memref<1x1x4x640xf32, #tpu.memory_space<vmem>>, %arg3: memref<4x36xbf16, #tpu.memory_space<vmem>>, %arg4: memref<4x1xf32, #tpu.memory_space<vmem>>, %arg5: memref<2x36xbf16, #tpu.memory_space<vmem>>, %arg6: memref<2x1xf32, #tpu.memory_space<vmem>>, %arg7: memref<1x2x384xf32, #tpu.memory_space<vmem>>, %arg8: memref<36x512xbf16, #tpu.memory_space<vmem>>, %arg9: memref<36x384xbf16, #tpu.memory_space<vmem>>) attributes {dimension_semantics = [#tpu.dimension_semantics<parallel>, #tpu.dimension_semantics<parallel>], iteration_bounds = array<i64: 2, 1>, scalar_prefetch = 0 : i64, scratch_operands = 2 : i64, tpu.core_type = #tpu.core_type<tc>, window_params = [{transform_indices = @transform_0, window_bounds = array<i64: 1, 1, 4, 640>}, {pipeline_mode = #tpu.pipeline_mode<synchronous>, transform_indices = @transform_1, window_bounds = array<i64: 4, 36>}, {pipeline_mode = #tpu.pipeline_mode<synchronous>, transform_indices = @transform_2, window_bounds = array<i64: 4, 1>}, {pipeline_mode = #tpu.pipeline_mode<synchronous>, transform_indices = @transform_3, window_bounds = array<i64: 2, 36>}, {pipeline_mode = #tpu.pipeline_mode<synchronous>, transform_indices = @transform_4, window_bounds = array<i64: 2, 1>}, {transform_indices = @transform_5, window_bounds = array<i64: 1, 2, 384>}]} {
    %c0 = arith.constant 0 : index
    %c0_0 = arith.constant 0 : index
    %c0_1 = arith.constant 0 : index
    %c0_2 = arith.constant 0 : index
    %0 = vector.load %arg2[%c0, %c0_0, %c0_1, %c0_2] : memref<1x1x4x640xf32, #tpu.memory_space<vmem>>, vector<1x1x4x512xf32>
    %1 = vector.shape_cast %0 : vector<1x1x4x512xf32> to vector<4x512xf32>
    %2 = arith.truncf %1 : vector<4x512xf32> to vector<4x512xbf16>
    %c0_3 = arith.constant 0 : index
    %c0_4 = arith.constant 0 : index
    %3 = vector.load %arg8[%c0_3, %c0_4] : memref<36x512xbf16, #tpu.memory_space<vmem>>, vector<4x512xbf16>
    tpu.vector_store %arg8[%c0_3, %c0_4], %2 {strides = array<i32>} : memref<36x512xbf16, #tpu.memory_space<vmem>>, vector<4x512xbf16>,
    %c0_5 = arith.constant 0 : index
    %c0_6 = arith.constant 0 : index
    %c0_7 = arith.constant 0 : index
    %c1 = arith.constant 1 : index
    %4 = vector.load %arg2[%c0_5, %c0_6, %c0_7, %c1] : memref<1x1x4x640xf32, #tpu.memory_space<vmem>>, vector<1x1x4x512xf32>
    %5 = vector.shape_cast %4 : vector<1x1x4x512xf32> to vector<4x512xf32>
    %6 = arith.truncf %5 : vector<4x512xf32> to vector<4x512xbf16>
    %c4 = arith.constant 4 : index
    %c0_8 = arith.constant 0 : index
    %7 = vector.load %arg8[%c4, %c0_8] : memref<36x512xbf16, #tpu.memory_space<vmem>>, vector<4x512xbf16>
    tpu.vector_store %arg8[%c4, %c0_8], %6 {strides = array<i32>} : memref<36x512xbf16, #tpu.memory_space<vmem>>, vector<4x512xbf16>,
    %c0_9 = arith.constant 0 : index
    %c0_10 = arith.constant 0 : index
    %c0_11 = arith.constant 0 : index
    %c2 = arith.constant 2 : index
    %8 = vector.load %arg2[%c0_9, %c0_10, %c0_11, %c2] : memref<1x1x4x640xf32, #tpu.memory_space<vmem>>, vector<1x1x4x512xf32>
    %9 = vector.shape_cast %8 : vector<1x1x4x512xf32> to vector<4x512xf32>
    %10 = arith.truncf %9 : vector<4x512xf32> to vector<4x512xbf16>
    %c8 = arith.constant 8 : index
    %c0_12 = arith.constant 0 : index
    %11 = vector.load %arg8[%c8, %c0_12] : memref<36x512xbf16, #tpu.memory_space<vmem>>, vector<4x512xbf16>
    tpu.vector_store %arg8[%c8, %c0_12], %10 {strides = array<i32>} : memref<36x512xbf16, #tpu.memory_space<vmem>>, vector<4x512xbf16>,
    %c0_13 = arith.constant 0 : index
    %c0_14 = arith.constant 0 : index
    %c0_15 = arith.constant 0 : index
    %c18 = arith.constant 18 : index
    %12 = vector.load %arg2[%c0_13, %c0_14, %c0_15, %c18] : memref<1x1x4x640xf32, #tpu.memory_space<vmem>>, vector<1x1x4x512xf32>
    %13 = vector.shape_cast %12 : vector<1x1x4x512xf32> to vector<4x512xf32>
    %14 = arith.truncf %13 : vector<4x512xf32> to vector<4x512xbf16>
    %c12 = arith.constant 12 : index
    %c0_16 = arith.constant 0 : index
    %15 = vector.load %arg8[%c12, %c0_16] : memref<36x512xbf16, #tpu.memory_space<vmem>>, vector<4x512xbf16>
    tpu.vector_store %arg8[%c12, %c0_16], %14 {strides = array<i32>} : memref<36x512xbf16, #tpu.memory_space<vmem>>, vector<4x512xbf16>,
    %c0_17 = arith.constant 0 : index
    %c0_18 = arith.constant 0 : index
    %c0_19 = arith.constant 0 : index
    %c19 = arith.constant 19 : index
    %16 = vector.load %arg2[%c0_17, %c0_18, %c0_19, %c19] : memref<1x1x4x640xf32, #tpu.memory_space<vmem>>, vector<1x1x4x512xf32>
    %17 = vector.shape_cast %16 : vector<1x1x4x512xf32> to vector<4x512xf32>
    %18 = arith.truncf %17 : vector<4x512xf32> to vector<4x512xbf16>
    %c16 = arith.constant 16 : index
    %c0_20 = arith.constant 0 : index
    %19 = vector.load %arg8[%c16, %c0_20] : memref<36x512xbf16, #tpu.memory_space<vmem>>, vector<4x512xbf16>
    tpu.vector_store %arg8[%c16, %c0_20], %18 {strides = array<i32>} : memref<36x512xbf16, #tpu.memory_space<vmem>>, vector<4x512xbf16>,
    %c0_21 = arith.constant 0 : index
    %c0_22 = arith.constant 0 : index
    %c0_23 = arith.constant 0 : index
    %c20 = arith.constant 20 : index
    %20 = vector.load %arg2[%c0_21, %c0_22, %c0_23, %c20] : memref<1x1x4x640xf32, #tpu.memory_space<vmem>>, vector<1x1x4x512xf32>
    %21 = vector.shape_cast %20 : vector<1x1x4x512xf32> to vector<4x512xf32>
    %22 = arith.truncf %21 : vector<4x512xf32> to vector<4x512xbf16>
    %c20_24 = arith.constant 20 : index
    %c0_25 = arith.constant 0 : index
    %23 = vector.load %arg8[%c20_24, %c0_25] : memref<36x512xbf16, #tpu.memory_space<vmem>>, vector<4x512xbf16>
    tpu.vector_store %arg8[%c20_24, %c0_25], %22 {strides = array<i32>} : memref<36x512xbf16, #tpu.memory_space<vmem>>, vector<4x512xbf16>,
    %c0_26 = arith.constant 0 : index
    %c0_27 = arith.constant 0 : index
    %c0_28 = arith.constant 0 : index
    %c36 = arith.constant 36 : index
    %24 = vector.load %arg2[%c0_26, %c0_27, %c0_28, %c36] : memref<1x1x4x640xf32, #tpu.memory_space<vmem>>, vector<1x1x4x512xf32>
    %25 = vector.shape_cast %24 : vector<1x1x4x512xf32> to vector<4x512xf32>
    %26 = arith.truncf %25 : vector<4x512xf32> to vector<4x512xbf16>
    %c24 = arith.constant 24 : index
    %c0_29 = arith.constant 0 : index
    %27 = vector.load %arg8[%c24, %c0_29] : memref<36x512xbf16, #tpu.memory_space<vmem>>, vector<4x512xbf16>
    tpu.vector_store %arg8[%c24, %c0_29], %26 {strides = array<i32>} : memref<36x512xbf16, #tpu.memory_space<vmem>>, vector<4x512xbf16>,
    %c0_30 = arith.constant 0 : index
    %c0_31 = arith.constant 0 : index
    %c0_32 = arith.constant 0 : index
    %c37 = arith.constant 37 : index
    %28 = vector.load %arg2[%c0_30, %c0_31, %c0_32, %c37] : memref<1x1x4x640xf32, #tpu.memory_space<vmem>>, vector<1x1x4x512xf32>
    %29 = vector.shape_cast %28 : vector<1x1x4x512xf32> to vector<4x512xf32>
    %30 = arith.truncf %29 : vector<4x512xf32> to vector<4x512xbf16>
    %c28 = arith.constant 28 : index
    %c0_33 = arith.constant 0 : index
    %31 = vector.load %arg8[%c28, %c0_33] : memref<36x512xbf16, #tpu.memory_space<vmem>>, vector<4x512xbf16>
    tpu.vector_store %arg8[%c28, %c0_33], %30 {strides = array<i32>} : memref<36x512xbf16, #tpu.memory_space<vmem>>, vector<4x512xbf16>,
    %c0_34 = arith.constant 0 : index
    %c0_35 = arith.constant 0 : index
    %c0_36 = arith.constant 0 : index
    %c38 = arith.constant 38 : index
    %32 = vector.load %arg2[%c0_34, %c0_35, %c0_36, %c38] : memref<1x1x4x640xf32, #tpu.memory_space<vmem>>, vector<1x1x4x512xf32>
    %33 = vector.shape_cast %32 : vector<1x1x4x512xf32> to vector<4x512xf32>
    %34 = arith.truncf %33 : vector<4x512xf32> to vector<4x512xbf16>
    %c32 = arith.constant 32 : index
    %c0_37 = arith.constant 0 : index
    %35 = vector.load %arg8[%c32, %c0_37] : memref<36x512xbf16, #tpu.memory_space<vmem>>, vector<4x512xbf16>
    tpu.vector_store %arg8[%c32, %c0_37], %34 {strides = array<i32>} : memref<36x512xbf16, #tpu.memory_space<vmem>>, vector<4x512xbf16>,
    %c0_38 = arith.constant 0 : index
    %c0_39 = arith.constant 0 : index
    %36 = vector.load %arg3[%c0_38, %c0_39] : memref<4x36xbf16, #tpu.memory_space<vmem>>, vector<4x36xbf16>
    %c0_40 = arith.constant 0 : index
    %c0_41 = arith.constant 0 : index
    %37 = vector.load %arg8[%c0_40, %c0_41] : memref<36x512xbf16, #tpu.memory_space<vmem>>, vector<36x512xbf16>
    %cst = arith.constant dense<0.000000e+00> : vector<4x512xf32>
    %38 = tpu.matmul %36, %37, %cst {dimension_numbers = #tpu.dot_dimension_numbers<[1], [0], [0], [1], [0, 0, 1, 1], [], []>} : vector<4x36xbf16>, vector<36x512xbf16>, vector<4x512xf32> -> vector<4x512xf32>
    %c0_42 = arith.constant 0 : index
    %c0_43 = arith.constant 0 : index
    %39 = vector.load %arg4[%c0_42, %c0_43] : memref<4x1xf32, #tpu.memory_space<vmem>>, vector<4x1xf32>
    %40 = vector.broadcast %39 : vector<4x1xf32> to vector<4x512xf32>
    %41 = arith.addf %38, %40 : vector<4x512xf32>
    %cst_44 = arith.constant 0.000000e+00 : f32
    %42 = vector.broadcast %cst_44 : f32 to vector<4x512xf32>
    %43 = arith.subf %42, %41 : vector<4x512xf32>
    %44 = math.exp %43 : vector<4x512xf32>
    %cst_45 = arith.constant 1.000000e+00 : f32
    %45 = vector.broadcast %cst_45 : f32 to vector<4x512xf32>
    %46 = arith.addf %45, %44 : vector<4x512xf32>
    %47 = tpu.reciprocal %46 {approx = true} : vector<4x512xf32> -> vector<4x512xf32>
    %c0_46 = arith.constant 0 : index
    %c0_47 = arith.constant 0 : index
    %c0_48 = arith.constant 0 : index
    %c19_49 = arith.constant 19 : index
    %48 = vector.load %arg2[%c0_46, %c0_47, %c0_48, %c19_49] : memref<1x1x4x640xf32, #tpu.memory_space<vmem>>, vector<1x1x4x512xf32>
    %49 = vector.shape_cast %48 : vector<1x1x4x512xf32> to vector<4x512xf32>
    %50 = arith.mulf %49, %47 : vector<4x512xf32>
    %51 = arith.truncf %50 : vector<4x512xf32> to vector<4x512xbf16>
    %52 = vector.extract_strided_slice %51 {offsets = [0, 0], sizes = [4, 384], strides = [1, 1]} : vector<4x512xbf16> to vector<4x384xbf16>
    %c0_50 = arith.constant 0 : index
    %c0_51 = arith.constant 0 : index
    %53 = vector.load %arg9[%c0_50, %c0_51] : memref<36x384xbf16, #tpu.memory_space<vmem>>, vector<4x384xbf16>
    tpu.vector_store %arg9[%c0_50, %c0_51], %52 {strides = array<i32>} : memref<36x384xbf16, #tpu.memory_space<vmem>>, vector<4x384xbf16>,
    %54 = vector.extract_strided_slice %51 {offsets = [0, 1], sizes = [4, 384], strides = [1, 1]} : vector<4x512xbf16> to vector<4x384xbf16>
    %c4_52 = arith.constant 4 : index
    %c0_53 = arith.constant 0 : index
    %55 = vector.load %arg9[%c4_52, %c0_53] : memref<36x384xbf16, #tpu.memory_space<vmem>>, vector<4x384xbf16>
    tpu.vector_store %arg9[%c4_52, %c0_53], %54 {strides = array<i32>} : memref<36x384xbf16, #tpu.memory_space<vmem>>, vector<4x384xbf16>,
    %56 = vector.extract_strided_slice %51 {offsets = [0, 2], sizes = [4, 384], strides = [1, 1]} : vector<4x512xbf16> to vector<4x384xbf16>
    %c8_54 = arith.constant 8 : index
    %c0_55 = arith.constant 0 : index
    %57 = vector.load %arg9[%c8_54, %c0_55] : memref<36x384xbf16, #tpu.memory_space<vmem>>, vector<4x384xbf16>
    tpu.vector_store %arg9[%c8_54, %c0_55], %56 {strides = array<i32>} : memref<36x384xbf16, #tpu.memory_space<vmem>>, vector<4x384xbf16>,
    %58 = vector.extract_strided_slice %51 {offsets = [0, 18], sizes = [4, 384], strides = [1, 1]} : vector<4x512xbf16> to vector<4x384xbf16>
    %c12_56 = arith.constant 12 : index
    %c0_57 = arith.constant 0 : index
    %59 = vector.load %arg9[%c12_56, %c0_57] : memref<36x384xbf16, #tpu.memory_space<vmem>>, vector<4x384xbf16>
    tpu.vector_store %arg9[%c12_56, %c0_57], %58 {strides = array<i32>} : memref<36x384xbf16, #tpu.memory_space<vmem>>, vector<4x384xbf16>,
    %60 = vector.extract_strided_slice %51 {offsets = [0, 19], sizes = [4, 384], strides = [1, 1]} : vector<4x512xbf16> to vector<4x384xbf16>
    %c16_58 = arith.constant 16 : index
    %c0_59 = arith.constant 0 : index
    %61 = vector.load %arg9[%c16_58, %c0_59] : memref<36x384xbf16, #tpu.memory_space<vmem>>, vector<4x384xbf16>
    tpu.vector_store %arg9[%c16_58, %c0_59], %60 {strides = array<i32>} : memref<36x384xbf16, #tpu.memory_space<vmem>>, vector<4x384xbf16>,
    %62 = vector.extract_strided_slice %51 {offsets = [0, 20], sizes = [4, 384], strides = [1, 1]} : vector<4x512xbf16> to vector<4x384xbf16>
    %c20_60 = arith.constant 20 : index
    %c0_61 = arith.constant 0 : index
    %63 = vector.load %arg9[%c20_60, %c0_61] : memref<36x384xbf16, #tpu.memory_space<vmem>>, vector<4x384xbf16>
    tpu.vector_store %arg9[%c20_60, %c0_61], %62 {strides = array<i32>} : memref<36x384xbf16, #tpu.memory_space<vmem>>, vector<4x384xbf16>,
    %64 = vector.extract_strided_slice %51 {offsets = [0, 36], sizes = [4, 384], strides = [1, 1]} : vector<4x512xbf16> to vector<4x384xbf16>
    %c24_62 = arith.constant 24 : index
    %c0_63 = arith.constant 0 : index
    %65 = vector.load %arg9[%c24_62, %c0_63] : memref<36x384xbf16, #tpu.memory_space<vmem>>, vector<4x384xbf16>
    tpu.vector_store %arg9[%c24_62, %c0_63], %64 {strides = array<i32>} : memref<36x384xbf16, #tpu.memory_space<vmem>>, vector<4x384xbf16>,
    %66 = vector.extract_strided_slice %51 {offsets = [0, 37], sizes = [4, 384], strides = [1, 1]} : vector<4x512xbf16> to vector<4x384xbf16>
    %c28_64 = arith.constant 28 : index
    %c0_65 = arith.constant 0 : index
    %67 = vector.load %arg9[%c28_64, %c0_65] : memref<36x384xbf16, #tpu.memory_space<vmem>>, vector<4x384xbf16>
    tpu.vector_store %arg9[%c28_64, %c0_65], %66 {strides = array<i32>} : memref<36x384xbf16, #tpu.memory_space<vmem>>, vector<4x384xbf16>,
    %68 = vector.extract_strided_slice %51 {offsets = [0, 38], sizes = [4, 384], strides = [1, 1]} : vector<4x512xbf16> to vector<4x384xbf16>
    %c32_66 = arith.constant 32 : index
    %c0_67 = arith.constant 0 : index
    %69 = vector.load %arg9[%c32_66, %c0_67] : memref<36x384xbf16, #tpu.memory_space<vmem>>, vector<4x384xbf16>
    tpu.vector_store %arg9[%c32_66, %c0_67], %68 {strides = array<i32>} : memref<36x384xbf16, #tpu.memory_space<vmem>>, vector<4x384xbf16>,
    %c0_68 = arith.constant 0 : index
    %c0_69 = arith.constant 0 : index
    %70 = vector.load %arg5[%c0_68, %c0_69] : memref<2x36xbf16, #tpu.memory_space<vmem>>, vector<2x36xbf16>
    %c0_70 = arith.constant 0 : index
    %c0_71 = arith.constant 0 : index
    %71 = vector.load %arg9[%c0_70, %c0_71] : memref<36x384xbf16, #tpu.memory_space<vmem>>, vector<36x384xbf16>
    %cst_72 = arith.constant dense<0.000000e+00> : vector<2x384xf32>
    %72 = tpu.matmul %70, %71, %cst_72 {dimension_numbers = #tpu.dot_dimension_numbers<[1], [0], [0], [1], [0, 0, 1, 1], [], []>} : vector<2x36xbf16>, vector<36x384xbf16>, vector<2x384xf32> -> vector<2x384xf32>
    %c0_73 = arith.constant 0 : index
    %c0_74 = arith.constant 0 : index
    %73 = vector.load %arg6[%c0_73, %c0_74] : memref<2x1xf32, #tpu.memory_space<vmem>>, vector<2x1xf32>
    %74 = vector.broadcast %73 : vector<2x1xf32> to vector<2x384xf32>
    %75 = arith.addf %72, %74 : vector<2x384xf32>
    %cst_75 = arith.constant 0.000000e+00 : f32
    %76 = vector.broadcast %cst_75 : f32 to vector<2x384xf32>
    %77 = arith.maximumf %75, %76 : vector<2x384xf32>
    %cst_76 = arith.constant 6.000000e+00 : f32
    %78 = vector.broadcast %cst_76 : f32 to vector<2x384xf32>
    %79 = arith.minimumf %77, %78 : vector<2x384xf32>
    %c0_77 = arith.constant 0 : index
    %c0_78 = arith.constant 0 : index
    %c0_79 = arith.constant 0 : index
    %80 = vector.load %arg7[%c0_77, %c0_78, %c0_79] : memref<1x2x384xf32, #tpu.memory_space<vmem>>, vector<1x2x384xf32>
    %81 = vector.shape_cast %80 : vector<1x2x384xf32> to vector<2x384xf32>
    %82 = vector.shape_cast %79 : vector<2x384xf32> to vector<1x2x384xf32>
    tpu.vector_store %arg7[%c0_77, %c0_78, %c0_79], %82 {strides = array<i32>} : memref<1x2x384xf32, #tpu.memory_space<vmem>>, vector<1x2x384xf32>,
    return
  }
  func.func @transform_0(%arg0: i32, %arg1: i32) -> (i32, i32, i32, i32) {
    %c0_i32 = arith.constant 0 : i32
    %c0_i32_0 = arith.constant 0 : i32
    %c0_i32_1 = arith.constant 0 : i32
    return %arg0, %arg1, %c0_i32, %c0_i32_0 : i32, i32, i32, i32
  }
  func.func @transform_1(%arg0: i32, %arg1: i32) -> (i32, i32) {
    %c0_i32 = arith.constant 0 : i32
    %c0_i32_0 = arith.constant 0 : i32
    %c0_i32_1 = arith.constant 0 : i32
    return %c0_i32, %c0_i32_0 : i32, i32
  }
  func.func @transform_2(%arg0: i32, %arg1: i32) -> (i32, i32) {
    %c0_i32 = arith.constant 0 : i32
    %c0_i32_0 = arith.constant 0 : i32
    %c0_i32_1 = arith.constant 0 : i32
    return %c0_i32, %c0_i32_0 : i32, i32
  }
  func.func @transform_3(%arg0: i32, %arg1: i32) -> (i32, i32) {
    %c0_i32 = arith.constant 0 : i32
    %c0_i32_0 = arith.constant 0 : i32
    %c0_i32_1 = arith.constant 0 : i32
    return %c0_i32, %c0_i32_0 : i32, i32
  }
  func.func @transform_4(%arg0: i32, %arg1: i32) -> (i32, i32) {
    %c0_i32 = arith.constant 0 : i32
    %c0_i32_0 = arith.constant 0 : i32
    %c0_i32_1 = arith.constant 0 : i32
    return %c0_i32, %c0_i32_0 : i32, i32
  }
  func.func @transform_5(%arg0: i32, %arg1: i32) -> (i32, i32, i32) {
    %c0_i32 = arith.constant 0 : i32
    %c0_i32_0 = arith.constant 0 : i32
    return %arg0, %c0_i32, %arg1 : i32, i32, i32
  }
}

</mosaic_0001>

<llo_original>
// kernel: _lambda_.1
$region0: #{_lambda_.1}
  #allocation0 [shape = 'u32[]', space=smem, size = 0x4, offset = 0x4, fixed_abs, tag = 'smem constant byte address 0x4 - core index']
  #allocation1 [shape = 'u32[144,128]{1,0:T(1,128)}', space=vmem, size = 0x12000, scoped, tag = 'internal scratch']
  #allocation2 [shape = 'bf16[36,512]{1,0:T(8,128)(2,1)}', space=vmem, size = 0xa000, scoped, tag = 'scratch operand']
  #allocation3 [shape = 'bf16[36,384]{1,0:T(8,128)(2,1)}', space=vmem, size = 0x7800, scoped, tag = 'scratch operand']
  %s0 = inlined_call_operand.vmem [shape: f32[2,1,4,640], index: 0, kind: input, shape index: {}]
  %s1 = inlined_call_operand.vmem [shape: bf16[4,36], index: 1, kind: input, shape index: {}]
  %s2 = inlined_call_operand.vmem [shape: f32[4,1], index: 2, kind: input, shape index: {}]
  %s3 = inlined_call_operand.vmem [shape: bf16[2,36], index: 3, kind: input, shape index: {}]
  %s4 = inlined_call_operand.vmem [shape: f32[2,1], index: 4, kind: input, shape index: {}]
  %s5 = inlined_call_operand.vmem [shape: f32[2,2,384], index: 5, kind: output, shape index: {}]
  %s6 = sld [smem:[#allocation0]]
  $region53: #{_lambda_.1} parent=0
    _
  %s8 = ssub.s32 1, %s6
  %s9 = scalar_select 0, %s8, %s6
  loop: start=0, step=1, limit=4
  $region2: #{_lambda_.1} parent=0 // loop_pre_header
    _
  $region3: #{_lambda_.1} parent=0 // loop_header
    %s11 = sphi 0, %s15
    %p12 = scmp.ge.s32.totalorder %s11, 4
    %s18 = sphi 0, %s30
    %s19 = sphi 0, %s26
    %s20 = sphi 0, %s18
    %s21 = sphi 0, %s19
    %s22 = sphi 0, %s20
    %s23 = sphi 0, %s21
    %s35 = sphi 0, %s37
    %s38 = sphi 0, %s35
    %s39 = sphi 0, %s38
    %s55 = sphi 0, %s39
    %s59 = sphi 0, %s59
    %s61 = sphi 0, %s59
    %s62 = sphi 0, %s61
    %s76 = sphi 0, %s62
    %s80 = sphi 0, %s80
    %s82 = sphi 0, %s80
    %s83 = sphi 0, %s82
    %s97 = sphi 0, %s83
    %s101 = sphi 0, %s101
    %s103 = sphi 0, %s101
    %s104 = sphi 0, %s103
    %s118 = sphi 0, %s104
    %s122 = sphi 0, %s122
    %s124 = sphi 0, %s122
    %s125 = sphi 0, %s124
    %s139 = sphi 0, %s125
    %s147 = sphi 0, %s149
    %s150 = sphi 0, %s147
    %s151 = sphi 0, %s150
    %s167 = sphi 0, %s151
  $region4: #{_lambda_.1} parent=0 // loop_header_branch
    %14 = sbr.rel (%p12) target = $region8
  $region5: #{_lambda_.1} parent=0 // loop_body
    %s16 = ssub.s32 %s11, 1
    %s17 = ssub.s32 %s11, 2
    %s24 = sadd.s32 1, %s19
    %p25 = scmp.ge.s32.totalorder %s24, 1
    %s26 = scalar_select %p25, 0, %s24
    %s27 = sadd.s32 1, %s18
    %s28 = scalar_select %p25, %s27, %s18
    %p29 = scmp.ge.s32.totalorder %s28, 2
    %s30 = scalar_select %p29, 0, %s28
    %s31 = ssub.s32 %s18, %s30
    %s32 = ssub.s32 %s19, %s26
    %s33 = sor.u32 %s31, %s32
    %p34 = scmp.eq.s32.totalorder %s33, 0
    %s36 = sadd.s32 %s35, 1
    %s37 = scalar_select %p34, %s35, %s36
    %p40 = pneg %p34
    %p41 = scmp.eq.s32.totalorder %s11, 1
    %p42 = por %p40, %p41
    %p43 = scmp.ne.s32.totalorder %s35, %s38
    %p44 = scmp.eq.s32.totalorder %s11, 0
    %p45 = por %p43, %p44
    %p46 = scmp.ne.s32.totalorder %s35, %s38
    %p47 = scmp.eq.s32.totalorder %s16, 1
    %p48 = por %p46, %p47
    %p49 = scmp.ne.s32.totalorder %s38, %s39
    %p50 = scmp.eq.s32.totalorder %s16, 0
    %p51 = por %p49, %p50
    %p52 = scmp.ne.s32.totalorder %s38, %s39
    %p53 = scmp.eq.s32.totalorder %s17, 1
    %p54 = por %p52, %p53
    %p56 = scmp.ne.s32.totalorder %s39, %s55
    %p57 = scmp.eq.s32.totalorder %s17, 0
    %p58 = por %p56, %p57
    %s60 = sadd.s32 %s59, 1
    %p63 = scmp.eq.s32.totalorder %s11, 1
    %p64 = scmp.ne.s32.totalorder %s59, %s61
    %p65 = scmp.eq.s32.totalorder %s11, 0
    %p66 = por %p64, %p65
    %p67 = scmp.ne.s32.totalorder %s59, %s61
    %p68 = scmp.eq.s32.totalorder %s16, 1
    %p69 = por %p67, %p68
    %p70 = scmp.ne.s32.totalorder %s61, %s62
    %p71 = scmp.eq.s32.totalorder %s16, 0
    %p72 = por %p70, %p71
    %p73 = scmp.ne.s32.totalorder %s61, %s62
    %p74 = scmp.eq.s32.totalorder %s17, 1
    %p75 = por %p73, %p74
    %p77 = scmp.ne.s32.totalorder %s62, %s76
    %p78 = scmp.eq.s32.totalorder %s17, 0
    %p79 = por %p77, %p78
    %s81 = sadd.s32 %s80, 1
    %p84 = scmp.eq.s32.totalorder %s11, 1
    %p85 = scmp.ne.s32.totalorder %s80, %s82
    %p86 = scmp.eq.s32.totalorder %s11, 0
    %p87 = por %p85, %p86
    %p88 = scmp.ne.s32.totalorder %s80, %s82
    %p89 = scmp.eq.s32.totalorder %s16, 1
    %p90 = por %p88, %p89
    %p91 = scmp.ne.s32.totalorder %s82, %s83
    %p92 = scmp.eq.s32.totalorder %s16, 0
    %p93 = por %p91, %p92
    %p94 = scmp.ne.s32.totalorder %s82, %s83
    %p95 = scmp.eq.s32.totalorder %s17, 1
    %p96 = por %p94, %p95
    %p98 = scmp.ne.s32.totalorder %s83, %s97
    %p99 = scmp.eq.s32.totalorder %s17, 0
    %p100 = por %p98, %p99
    %s102 = sadd.s32 %s101, 1
    %p105 = scmp.eq.s32.totalorder %s11, 1
    %p106 = scmp.ne.s32.totalorder %s101, %s103
    %p107 = scmp.eq.s32.totalorder %s11, 0
    %p108 = por %p106, %p107
    %p109 = scmp.ne.s32.totalorder %s101, %s103
    %p110 = scmp.eq.s32.totalorder %s16, 1
    %p111 = por %p109, %p110
    %p112 = scmp.ne.s32.totalorder %s103, %s104
    %p113 = scmp.eq.s32.totalorder %s16, 0
    %p114 = por %p112, %p113
    %p115 = scmp.ne.s32.totalorder %s103, %s104
    %p116 = scmp.eq.s32.totalorder %s17, 1
    %p117 = por %p115, %p116
    %p119 = scmp.ne.s32.totalorder %s104, %s118
    %p120 = scmp.eq.s32.totalorder %s17, 0
    %p121 = por %p119, %p120
    %s123 = sadd.s32 %s122, 1
    %p126 = scmp.eq.s32.totalorder %s11, 1
    %p127 = scmp.ne.s32.totalorder %s122, %s124
    %p128 = scmp.eq.s32.totalorder %s11, 0
    %p129 = por %p127, %p128
    %p130 = scmp.ne.s32.totalorder %s122, %s124
    %p131 = scmp.eq.s32.totalorder %s16, 1
    %p132 = por %p130, %p131
    %p133 = scmp.ne.s32.totalorder %s124, %s125
    %p134 = scmp.eq.s32.totalorder %s16, 0
    %p135 = por %p133, %p134
    %p136 = scmp.ne.s32.totalorder %s124, %s125
    %p137 = scmp.eq.s32.totalorder %s17, 1
    %p138 = por %p136, %p137
    %p140 = scmp.ne.s32.totalorder %s125, %s139
    %p141 = scmp.eq.s32.totalorder %s17, 0
    %p142 = por %p140, %p141
    %s143 = ssub.s32 %s18, %s30
    %s144 = ssub.s32 %s19, %s26
    %s145 = sor.u32 %s143, %s144
    %p146 = scmp.eq.s32.totalorder %s145, 0
    %s148 = sadd.s32 %s147, 1
    %s149 = scalar_select %p146, %s147, %s148
    %p152 = pneg %p146
    %p153 = scmp.eq.s32.totalorder %s11, 1
    %p154 = por %p152, %p153
    %p155 = scmp.ne.s32.totalorder %s147, %s150
    %p156 = scmp.eq.s32.totalorder %s11, 0
    %p157 = por %p155, %p156
    %p158 = scmp.ne.s32.totalorder %s147, %s150
    %p159 = scmp.eq.s32.totalorder %s16, 1
    %p160 = por %p158, %p159
    %p161 = scmp.ne.s32.totalorder %s150, %s151
    %p162 = scmp.eq.s32.totalorder %s16, 0
    %p163 = por %p161, %p162
    %p164 = scmp.ne.s32.totalorder %s150, %s151
    %p165 = scmp.eq.s32.totalorder %s17, 1
    %p166 = por %p164, %p165
    %p168 = scmp.ne.s32.totalorder %s151, %s167
    %p169 = scmp.eq.s32.totalorder %s17, 0
    %p170 = por %p168, %p169
    %p171 = scmp.le.s32.totalorder 1, %s11
    %p172 = scmp.lt.s32.totalorder %s11, 3
    %p173 = pnand %p171, %p172
    %p174 = pneg %p173
    // Predicated region
    $region9: #{_lambda_.1} parent=5 // pred_check
      _
    $region10: #{_lambda_.1} parent=5 // pred_check_branch
      %176 = sbr.rel (%p173) target = $region12
    $region11: #{_lambda_.1} parent=5 // pred_region
      %s177 = ssub.s32 %s11, 1
      // Predicated region
      $region13: #{_lambda_.1} parent=11 // pred_check
        %p178 = pneg %p72
      $region14: #{_lambda_.1} parent=11 // pred_check_branch
        %180 = sbr.rel (%p178) target = $region16
      $region15: #{_lambda_.1} parent=11 // pred_region
        _
      $region16: #{_lambda_.1} parent=11 // pred_fallthru
        _
      // Predicated region
      $region17: #{_lambda_.1} parent=11 // pred_check
        %p181 = pneg %p93
      $region18: #{_lambda_.1} parent=11 // pred_check_branch
        %183 = sbr.rel (%p181) target = $region20
      $region19: #{_lambda_.1} parent=11 // pred_region
        _
      $region20: #{_lambda_.1} parent=11 // pred_fallthru
        _
      // Predicated region
      $region21: #{_lambda_.1} parent=11 // pred_check
        %p184 = pneg %p114
      $region22: #{_lambda_.1} parent=11 // pred_check_branch
        %186 = sbr.rel (%p184) target = $region24
      $region23: #{_lambda_.1} parent=11 // pred_region
        _
      $region24: #{_lambda_.1} parent=11 // pred_fallthru
        _
      // Predicated region
      $region25: #{_lambda_.1} parent=11 // pred_check
        %p187 = pneg %p135
      $region26: #{_lambda_.1} parent=11 // pred_check_branch
        %189 = sbr.rel (%p187) target = $region28
      $region27: #{_lambda_.1} parent=11 // pred_region
        _
      $region28: #{_lambda_.1} parent=11 // pred_fallthru
        _
    $region12: #{_lambda_.1} parent=5 // pred_fallthru
      _
    %p190 = scmp.lt.s32.totalorder %s11, 2
    // Predicated region
    $region29: #{_lambda_.1} parent=5 // pred_check
      %p191 = pneg %p190
    $region30: #{_lambda_.1} parent=5 // pred_check_branch
      %193 = sbr.rel (%p191) target = $region32
    $region31: #{_lambda_.1} parent=5 // pred_region
      // Predicated region
      $region33: #{_lambda_.1} parent=31 // pred_check
        %p194 = pneg %p45
      $region34: #{_lambda_.1} parent=31 // pred_check_branch
        %196 = sbr.rel (%p194) target = $region36
      $region35: #{_lambda_.1} parent=31 // pred_region
        %p197 = scmp.lt.s32.totalorder %s18, 1
        %s198 = scalar_select %p197, %s18, 1
        %p199 = scmp.lt.s32.totalorder %s19, 0
        %s200 = scalar_select %p199, %s19, 0
        %s201 = smul.addr %s200, 5
        %s202 = smul.addr %s198, 5
        %s203 = sadd.s32 %s201, %s202
        %s204 = smul.addr %s203, 4
        %s205 = scalar_lea.vmem %s0, %s204
      $region36: #{_lambda_.1} parent=31 // pred_fallthru
        _
    $region32: #{_lambda_.1} parent=5 // pred_fallthru
      _
    %p206 = scmp.le.s32.totalorder 1, %s11
    %p207 = scmp.lt.s32.totalorder %s11, 3
    %p208 = pnand %p206, %p207
    %p209 = pneg %p208
    // Predicated region
    $region37: #{_lambda_.1} parent=5 // pred_check
      _
    $region38: #{_lambda_.1} parent=5 // pred_check_branch
      %211 = sbr.rel (%p208) target = $region40
    $region39: #{_lambda_.1} parent=5 // pred_region
      %s212 = ssub.s32 %s11, 1
      %p213 = scmp.lt.s32.totalorder %s20, 1
      %s214 = scalar_select %p213, %s20, 1
      %p215 = scmp.lt.s32.totalorder %s21, 0
      %s216 = scalar_select %p215, %s21, 0
      %s217 = smul.addr %s216, 5
      %s218 = smul.addr %s214, 5
      %s219 = sadd.s32 %s217, %s218
      %s220 = smul.addr %s219, 4
      %s221 = scalar_lea.vmem %s0, %s220
      %p222 = pneg %p51
      %p223 = pneg %p48
      %p224 = pneg %p72
      %p225 = pneg %p69
      %p226 = pneg %p93
      %p227 = pneg %p90
      %p228 = pneg %p114
      %p229 = pneg %p111
      %p230 = pneg %p135
      %p231 = pneg %p132
      %p232 = pneg %p163
      %p233 = pneg %p160
      %s234 = smul.u32 3, %s21
      %p235 = scmp.lt.s32.totalorder %s20, 1
      %s236 = scalar_select %p235, %s20, 1
      %p237 = scmp.lt.s32.totalorder %s234, 2
      %s238 = scalar_select %p237, %s234, 2
      %s239 = smul.addr %s236, 3
      %s240 = sadd.s32 %s238, %s239
      %s241 = smul.addr %s240, 2
      %s242 = scalar_lea.vmem %s5, %s241
      %p243 = scmp.lt.s32.totalorder %s20, 1
      %s244 = scalar_select %p243, %s20, 1
      %p245 = scmp.lt.s32.totalorder %s21, 0
      %s246 = scalar_select %p245, %s21, 0
      %s247 = smul.addr %s246, 5
      %s248 = smul.addr %s244, 5
      %s249 = sadd.s32 %s247, %s248
      %s250 = smul.addr %s249, 4
      %s251 = scalar_lea.vmem %s0, %s250
      %s252 = smul.u32 3, %s21
      %p253 = scmp.lt.s32.totalorder %s20, 1
      %s254 = scalar_select %p253, %s20, 1
      %p255 = scmp.lt.s32.totalorder %s252, 2
      %s256 = scalar_select %p255, %s252, 2
      %s257 = smul.addr %s254, 3
      %s258 = sadd.s32 %s256, %s257
      %s259 = smul.addr %s258, 2
      %s260 = scalar_lea.vmem %s5, %s259
      %s261 = smul.u32 3, %s21
      %v263 = vld [vmem:[%s251] sm:$0xff]
      %v264 = vld [vmem:[%s251 + $0x8] sm:$0xff]
      %v267 = vcombine.high %v263, %v263
      %v268 = vcombine.high %v264, %v264
      %v271 = vpack.c.bf16 %v263, %v263
      %v272 = vpack.c.bf16 %v267, %v267
      %v273 = vpack.c.bf16 %v264, %v264
      %v274 = vpack.c.bf16 %v268, %v268
      %v279 = vunpack.c.l.b16 %v271
      %v280 = vunpack.c.l.b16 %v272
      %v281 = vunpack.c.l.b16 %v273
      %v282 = vunpack.c.l.b16 %v274
      %v283 = vpack.c.b16 %v280, %v279
      %v284 = vpack.c.b16 %v282, %v281
      %287 = vst [vmem:[#allocation2] sm:$0x33] %v283
      %288 = vst [vmem:[#allocation2 + $0x8] sm:$0x33] %v284
      %v289 = vld [vmem:[%s251] sm:$0xff]
      %v290 = vld [vmem:[%s251 + $0x8] sm:$0xff]
      %v291 = vld [vmem:[%s251 + $0x10] sm:$0xf]
      %v294 = vcombine.high %v289, %v289
      %v295 = vcombine.high %v290, %v290
      %v298 = vpack.c.bf16 %v289, %v289
      %v299 = vpack.c.bf16 %v294, %v294
      %v300 = vpack.c.bf16 %v290, %v290
      %v301 = vpack.c.bf16 %v295, %v295
      %v302 = vpack.c.bf16 %v291, %v291
      %v308 = vunpack.c.l.b16 %v298
      %v309 = vunpack.c.l.b16 %v299
      %v310 = vunpack.c.l.b16 %v300
      %v311 = vunpack.c.l.b16 %v301
      %v312 = vunpack.c.l.b16 %v302
      %v313 = vpack.c.b16 %v309, %v308
      %v314 = vpack.c.b16 %v311, %v310
      %v315 = vpack.c.b16 %v312, %v312
      %v316 = vrot.slane %v313, 6
      %v317 = vrot.slane %v314, 6
      %v318 = vrot.slane %v315, 6
      %319 = vrot.lane.b32.xlu0 %v316, 127
      %v320 = vpop.permute.xlu0 %319
      %321 = vrot.lane.b32.xlu0 %v317, 127
      %v322 = vpop.permute.xlu0 %321
      %323 = vrot.lane.b32.xlu0 %v318, 127
      %v324 = vpop.permute.xlu0 %323
      %v325 = vrot.slane %v320, 4
      %v326 = vrot.slane %v322, 4
      %v327 = vrot.slane %v324, 4
      %vm328 = vcmask 1043456
      %v329 = vsel %vm328, %v325, %v326
      %vm330 = vcmask 1039360
      %v331 = vsel %vm330, %v320, %v329
      %v332 = vsel %vm328, %v326, %v327
      %v333 = vsel %vm330, %v322, %v332
      %336 = vst [vmem:[#allocation2] sm:$0xcc] %v331
      %337 = vst [vmem:[#allocation2 + $0x8] sm:$0xcc] %v333
      %v338 = vld [vmem:[%s251] sm:$0xff]
      %v339 = vld [vmem:[%s251 + $0x8] sm:$0xff]
      %v340 = vld [vmem:[%s251 + $0x10] sm:$0xf]
      %v343 = vcombine.high %v338, %v338
      %v344 = vcombine.high %v339, %v339
      %v347 = vpack.c.bf16 %v338, %v338
      %v348 = vpack.c.bf16 %v343, %v343
      %v349 = vpack.c.bf16 %v339, %v339
      %v350 = vpack.c.bf16 %v344, %v344
      %v351 = vpack.c.bf16 %v340, %v340
      %v357 = vunpack.c.l.b16 %v347
      %v358 = vunpack.c.l.b16 %v348
      %v359 = vunpack.c.l.b16 %v349
      %v360 = vunpack.c.l.b16 %v350
      %v361 = vunpack.c.l.b16 %v351
      %v362 = vpack.c.b16 %v358, %v357
      %v363 = vpack.c.b16 %v360, %v359
      %v364 = vpack.c.b16 %v361, %v361
      %365 = vrot.lane.b32.xlu0 %v362, 126
      %v366 = vpop.permute.xlu0 %365
      %367 = vrot.lane.b32.xlu0 %v363, 126
      %v368 = vpop.permute.xlu0 %367
      %369 = vrot.lane.b32.xlu0 %v364, 126
      %v370 = vpop.permute.xlu0 %369
      %v371 = vrot.slane %v366, 4
      %v372 = vrot.slane %v368, 4
      %v373 = vrot.slane %v370, 4
      %v374 = vsel %vm328, %v371, %v372
      %vm375 = vcmask 1031168
      %v376 = vsel %vm375, %v366, %v374
      %v377 = vsel %vm328, %v372, %v373
      %v378 = vsel %vm375, %v368, %v377
      %381 = vst [vmem:[#allocation2 + $0x10] sm:$0x33] %v376
      %382 = vst [vmem:[#allocation2 + $0x18] sm:$0x33] %v378
      %v383 = vld [vmem:[%s251] sm:$0xff]
      %v384 = vld [vmem:[%s251 + $0x8] sm:$0xff]
      %v385 = vld [vmem:[%s251 + $0x10] sm:$0xf]
      %v388 = vcombine.high %v383, %v383
      %v389 = vcombine.high %v384, %v384
      %v392 = vpack.c.bf16 %v383, %v383
      %v393 = vpack.c.bf16 %v388, %v388
      %v394 = vpack.c.bf16 %v384, %v384
      %v395 = vpack.c.bf16 %v389, %v389
      %v396 = vpack.c.bf16 %v385, %v385
      %v402 = vunpack.c.l.b16 %v392
      %v403 = vunpack.c.l.b16 %v393
      %v404 = vunpack.c.l.b16 %v394
      %v405 = vunpack.c.l.b16 %v395
      %v406 = vunpack.c.l.b16 %v396
      %v407 = vpack.c.b16 %v403, %v402
      %v408 = vpack.c.b16 %v405, %v404
      %v409 = vpack.c.b16 %v406, %v406
      %v410 = vrot.slane %v407, 6
      %v411 = vrot.slane %v408, 6
      %v412 = vrot.slane %v409, 6
      %413 = vrot.lane.b32.xlu0 %v410, 110
      %v414 = vpop.permute.xlu0 %413
      %415 = vrot.lane.b32.xlu0 %v411, 110
      %v416 = vpop.permute.xlu0 %415
      %417 = vrot.lane.b32.xlu0 %v412, 110
      %v418 = vpop.permute.xlu0 %417
      %v419 = vrot.slane %v414, 4
      %v420 = vrot.slane %v416, 4
      %v421 = vrot.slane %v418, 4
      %v422 = vsel %vm328, %v419, %v420
      %vm423 = vcmask 900096
      %v424 = vsel %vm423, %v414, %v422
      %v425 = vsel %vm328, %v420, %v421
      %v426 = vsel %vm423, %v416, %v425
      %429 = vst [vmem:[#allocation2 + $0x10] sm:$0xcc] %v424
      %430 = vst [vmem:[#allocation2 + $0x18] sm:$0xcc] %v426
      %v431 = vld [vmem:[%s251] sm:$0xff]
      %v432 = vld [vmem:[%s251 + $0x8] sm:$0xff]
      %v433 = vld [vmem:[%s251 + $0x10] sm:$0xf]
      %v436 = vcombine.high %v431, %v431
      %v437 = vcombine.high %v432, %v432
      %v440 = vpack.c.bf16 %v431, %v431
      %v441 = vpack.c.bf16 %v436, %v436
      %v442 = vpack.c.bf16 %v432, %v432
      %v443 = vpack.c.bf16 %v437, %v437
      %v444 = vpack.c.bf16 %v433, %v433
      %v450 = vunpack.c.l.b16 %v440
      %v451 = vunpack.c.l.b16 %v441
      %v452 = vunpack.c.l.b16 %v442
      %v453 = vunpack.c.l.b16 %v443
      %v454 = vunpack.c.l.b16 %v444
      %v455 = vpack.c.b16 %v451, %v450
      %v456 = vpack.c.b16 %v453, %v452
      %v457 = vpack.c.b16 %v454, %v454
      %458 = vrot.lane.b32.xlu0 %v455, 109
      %v459 = vpop.permute.xlu0 %458
      %460 = vrot.lane.b32.xlu0 %v456, 109
      %v461 = vpop.permute.xlu0 %460
      %462 = vrot.lane.b32.xlu0 %v457, 109
      %v463 = vpop.permute.xlu0 %462
      %v464 = vrot.slane %v459, 4
      %v465 = vrot.slane %v461, 4
      %v466 = vrot.slane %v463, 4
      %v467 = vsel %vm328, %v464, %v465
      %vm468 = vcmask 891904
      %v469 = vsel %vm468, %v459, %v467
      %v470 = vsel %vm328, %v465, %v466
      %v471 = vsel %vm468, %v461, %v470
      %474 = vst [vmem:[#allocation2 + $0x20] sm:$0x33] %v469
      %475 = vst [vmem:[#allocation2 + $0x28] sm:$0x33] %v471
      %v476 = vld [vmem:[%s251] sm:$0xff]
      %v477 = vld [vmem:[%s251 + $0x8] sm:$0xff]
      %v478 = vld [vmem:[%s251 + $0x10] sm:$0xf]
      %v481 = vcombine.high %v476, %v476
      %v482 = vcombine.high %v477, %v477
      %v485 = vpack.c.bf16 %v476, %v476
      %v486 = vpack.c.bf16 %v481, %v481
      %v487 = vpack.c.bf16 %v477, %v477
      %v488 = vpack.c.bf16 %v482, %v482
      %v489 = vpack.c.bf16 %v478, %v478
      %v495 = vunpack.c.l.b16 %v485
      %v496 = vunpack.c.l.b16 %v486
      %v497 = vunpack.c.l.b16 %v487
      %v498 = vunpack.c.l.b16 %v488
      %v499 = vunpack.c.l.b16 %v489
      %v500 = vpack.c.b16 %v496, %v495
      %v501 = vpack.c.b16 %v498, %v497
      %v502 = vpack.c.b16 %v499, %v499
      %v503 = vrot.slane %v500, 6
      %v504 = vrot.slane %v501, 6
      %v505 = vrot.slane %v502, 6
      %506 = vrot.lane.b32.xlu0 %v503, 108
      %v507 = vpop.permute.xlu0 %506
      %508 = vrot.lane.b32.xlu0 %v504, 108
      %v509 = vpop.permute.xlu0 %508
      %510 = vrot.lane.b32.xlu0 %v505, 108
      %v511 = vpop.permute.xlu0 %510
      %v512 = vrot.slane %v507, 4
      %v513 = vrot.slane %v509, 4
      %v514 = vrot.slane %v511, 4
      %v515 = vsel %vm328, %v512, %v513
      %vm516 = vcmask 883712
      %v517 = vsel %vm516, %v507, %v515
      %v518 = vsel %vm328, %v513, %v514
      %v519 = vsel %vm516, %v509, %v518
      %522 = vst [vmem:[#allocation2 + $0x20] sm:$0xcc] %v517
      %523 = vst [vmem:[#allocation2 + $0x28] sm:$0xcc] %v519
      %v524 = vld [vmem:[%s251] sm:$0xff]
      %v525 = vld [vmem:[%s251 + $0x8] sm:$0xff]
      %v526 = vld [vmem:[%s251 + $0x10] sm:$0xf]
      %v529 = vcombine.high %v524, %v524
      %v530 = vcombine.high %v525, %v525
      %v533 = vpack.c.bf16 %v524, %v524
      %v534 = vpack.c.bf16 %v529, %v529
      %v535 = vpack.c.bf16 %v525, %v525
      %v536 = vpack.c.bf16 %v530, %v530
      %v537 = vpack.c.bf16 %v526, %v526
      %v543 = vunpack.c.l.b16 %v533
      %v544 = vunpack.c.l.b16 %v534
      %v545 = vunpack.c.l.b16 %v535
      %v546 = vunpack.c.l.b16 %v536
      %v547 = vunpack.c.l.b16 %v537
      %v548 = vpack.c.b16 %v544, %v543
      %v549 = vpack.c.b16 %v546, %v545
      %v550 = vpack.c.b16 %v547, %v547
      %551 = vrot.lane.b32.xlu0 %v548, 92
      %v552 = vpop.permute.xlu0 %551
      %553 = vrot.lane.b32.xlu0 %v549, 92
      %v554 = vpop.permute.xlu0 %553
      %555 = vrot.lane.b32.xlu0 %v550, 92
      %v556 = vpop.permute.xlu0 %555
      %v557 = vrot.slane %v552, 4
      %v558 = vrot.slane %v554, 4
      %v559 = vrot.slane %v556, 4
      %v560 = vsel %vm328, %v557, %v558
      %vm561 = vcmask 752640
      %v562 = vsel %vm561, %v552, %v560
      %v563 = vsel %vm328, %v558, %v559
      %v564 = vsel %vm561, %v554, %v563
      %567 = vst [vmem:[#allocation2 + $0x30] sm:$0x33] %v562
      %568 = vst [vmem:[#allocation2 + $0x38] sm:$0x33] %v564
      %v569 = vld [vmem:[%s251] sm:$0xff]
      %v570 = vld [vmem:[%s251 + $0x8] sm:$0xff]
      %v571 = vld [vmem:[%s251 + $0x10] sm:$0xf]
      %v574 = vcombine.high %v569, %v569
      %v575 = vcombine.high %v570, %v570
      %v578 = vpack.c.bf16 %v569, %v569
      %v579 = vpack.c.bf16 %v574, %v574
      %v580 = vpack.c.bf16 %v570, %v570
      %v581 = vpack.c.bf16 %v575, %v575
      %v582 = vpack.c.bf16 %v571, %v571
      %v588 = vunpack.c.l.b16 %v578
      %v589 = vunpack.c.l.b16 %v579
      %v590 = vunpack.c.l.b16 %v580
      %v591 = vunpack.c.l.b16 %v581
      %v592 = vunpack.c.l.b16 %v582
      %v593 = vpack.c.b16 %v589, %v588
      %v594 = vpack.c.b16 %v591, %v590
      %v595 = vpack.c.b16 %v592, %v592
      %v596 = vrot.slane %v593, 6
      %v597 = vrot.slane %v594, 6
      %v598 = vrot.slane %v595, 6
      %599 = vrot.lane.b32.xlu0 %v596, 91
      %v600 = vpop.permute.xlu0 %599
      %601 = vrot.lane.b32.xlu0 %v597, 91
      %v602 = vpop.permute.xlu0 %601
      %603 = vrot.lane.b32.xlu0 %v598, 91
      %v604 = vpop.permute.xlu0 %603
      %v605 = vrot.slane %v600, 4
      %v606 = vrot.slane %v602, 4
      %v607 = vrot.slane %v604, 4
      %v608 = vsel %vm328, %v605, %v606
      %vm609 = vcmask 744448
      %v610 = vsel %vm609, %v600, %v608
      %v611 = vsel %vm328, %v606, %v607
      %v612 = vsel %vm609, %v602, %v611
      %615 = vst [vmem:[#allocation2 + $0x30] sm:$0xcc] %v610
      %616 = vst [vmem:[#allocation2 + $0x38] sm:$0xcc] %v612
      %v617 = vld [vmem:[%s251] sm:$0xff]
      %v618 = vld [vmem:[%s251 + $0x8] sm:$0xff]
      %v619 = vld [vmem:[%s251 + $0x10] sm:$0xf]
      %v622 = vcombine.high %v617, %v617
      %v623 = vcombine.high %v618, %v618
      %v626 = vpack.c.bf16 %v617, %v617
      %v627 = vpack.c.bf16 %v622, %v622
      %v628 = vpack.c.bf16 %v618, %v618
      %v629 = vpack.c.bf16 %v623, %v623
      %v630 = vpack.c.bf16 %v619, %v619
      %v636 = vunpack.c.l.b16 %v626
      %v637 = vunpack.c.l.b16 %v627
      %v638 = vunpack.c.l.b16 %v628
      %v639 = vunpack.c.l.b16 %v629
      %v640 = vunpack.c.l.b16 %v630
      %v641 = vpack.c.b16 %v637, %v636
      %v642 = vpack.c.b16 %v639, %v638
      %v643 = vpack.c.b16 %v640, %v640
      %644 = vrot.lane.b32.xlu0 %v641, 90
      %v645 = vpop.permute.xlu0 %644
      %646 = vrot.lane.b32.xlu0 %v642, 90
      %v647 = vpop.permute.xlu0 %646
      %648 = vrot.lane.b32.xlu0 %v643, 90
      %v649 = vpop.permute.xlu0 %648
      %v650 = vrot.slane %v645, 4
      %v651 = vrot.slane %v647, 4
      %v652 = vrot.slane %v649, 4
      %v653 = vsel %vm328, %v650, %v651
      %vm654 = vcmask 736256
      %v655 = vsel %vm654, %v645, %v653
      %v656 = vsel %vm328, %v651, %v652
      %v657 = vsel %vm654, %v647, %v656
      %660 = vst [vmem:[#allocation2 + $0x40] sm:$0x33] %v655
      %661 = vst [vmem:[#allocation2 + $0x48] sm:$0x33] %v657
      %v662 = vld [vmem:[%s1] sm:$0x3]
      %v663 = vld [vmem:[#allocation2] sm:$0xff]
      %v664 = vld [vmem:[#allocation2 + $0x8] sm:$0xff]
      %v665 = vld [vmem:[#allocation2 + $0x10] sm:$0xff]
      %v666 = vld [vmem:[#allocation2 + $0x18] sm:$0xff]
      %v667 = vld [vmem:[#allocation2 + $0x20] sm:$0xff]
      %v668 = vld [vmem:[#allocation2 + $0x28] sm:$0xff]
      %v669 = vld [vmem:[#allocation2 + $0x30] sm:$0xff]
      %v670 = vld [vmem:[#allocation2 + $0x38] sm:$0xff]
      %v671 = vld [vmem:[#allocation2 + $0x40] sm:$0x33]
      %v672 = vld [vmem:[#allocation2 + $0x48] sm:$0x33]
      %v673 = vld [vmem:[%s2] sm:$0xf]
      %675 = vset.pattern.permute.xlu0 0
      %676 = vperm.xlu0 %675, %v673
      %v677 = vpop.permute.xlu0 %676
      %v689 = vunpack.c.l.b16 %v663
      %v690 = vunpack.c.h.b16 %v663
      %v691 = vunpack.c.l.b16 %v664
      %v692 = vunpack.c.h.b16 %v664
      %v693 = vunpack.c.l.b16 %v665
      %v694 = vunpack.c.h.b16 %v665
      %v695 = vunpack.c.l.b16 %v666
      %v696 = vunpack.c.h.b16 %v666
      %v697 = vunpack.c.l.b16 %v667
      %v698 = vunpack.c.h.b16 %v667
      %v699 = vunpack.c.l.b16 %v668
      %v700 = vunpack.c.h.b16 %v668
      %v701 = vunpack.c.l.b16 %v669
      %v702 = vunpack.c.h.b16 %v669
      %v703 = vunpack.c.l.b16 %v670
      %v704 = vunpack.c.h.b16 %v670
      %v705 = vunpack.c.l.b16 %v671
      %v706 = vunpack.c.h.b16 %v671
      %v707 = vunpack.c.l.b16 %v672
      %v708 = vunpack.c.h.b16 %v672
      %v709 = vpack.c.b16 %v693, %v689
      %v710 = vpack.c.b16 %v694, %v690
      %v711 = vpack.c.b16 %v695, %v691
      %v712 = vpack.c.b16 %v696, %v692
      %v713 = vpack.c.b16 %v701, %v697
      %v714 = vpack.c.b16 %v702, %v698
      %v715 = vpack.c.b16 %v703, %v699
      %v716 = vpack.c.b16 %v704, %v700
      %v717 = vpack.c.b16 %v705, %v705
      %v718 = vpack.c.b16 %v706, %v706
      %v719 = vpack.c.b16 %v707, %v707
      %v720 = vpack.c.b16 %v708, %v708
      %vm729 = vcmask 293888
      %v731 = vsel %vm729, %v662, 0
      %vm733 = vcmask 1041408
      %v735 = vsel %vm733, %v717, 0
      %v738 = vsel %vm733, %v718, 0
      %v741 = vsel %vm733, %v719, 0
      %v744 = vsel %vm733, %v720, 0
      %746 = vmatprep.subr.bf16.mxu0 %v710
      %747 = vmatpush1.bf16.msra.mxu0 %v709
      %748 = vmatprep.subr.bf16.mxu0 %v714
      %749 = vmatpush1.bf16.msra.mxu0 %v713
      %750 = vmatprep.subr.bf16.mxu0 %v738
      %751 = vmatpush1.bf16.msra.mxu0 %v735
      %752 = vmatprep.subr.bf16.mxu0 0
      %753 = vmatpush1.bf16.msra.mxu0 0
      %754 = vmatprep.subr.bf16.mxu0 0
      %755 = vmatpush1.bf16.msra.mxu0 0
      %756 = vmatprep.subr.bf16.mxu0 0
      %757 = vmatpush1.bf16.msra.mxu0 0
      %758 = vmatprep.subr.bf16.mxu0 0
      %759 = vmatpush1.bf16.msra.mxu0 0
      %760 = vmatprep.subr.bf16.mxu0 0
      %761 = vmatpush1.bf16.msra.mxu0 0
      %762 = vmatprep.subr.bf16.mxu0 0
      %763 = vmatpush1.bf16.msra.mxu0 0
      %764 = vmatprep.subr.bf16.mxu0 0
      %765 = vmatpush1.bf16.msra.mxu0 0
      %766 = vmatprep.subr.bf16.mxu0 0
      %767 = vmatpush1.bf16.msra.mxu0 0
      %768 = vmatprep.subr.bf16.mxu0 0
      %769 = vmatpush1.bf16.msra.mxu0 0
      %770 = vmatprep.subr.bf16.mxu0 0
      %771 = vmatpush1.bf16.msra.mxu0 0
      %772 = vmatprep.subr.bf16.mxu0 0
      %773 = vmatpush1.bf16.msra.mxu0 0
      %774 = vmatprep.subr.bf16.mxu0 0
      %775 = vmatpush1.bf16.msra.mxu0 0
      %776 = vmatprep.subr.bf16.mxu0 0
      %777 = vmatpush1.bf16.msra.mxu0 0
      %778 = vmatprep.mubr.bf16.mxu0 0
      %779 = vmatmul.mubr.bf16.gmra.mrb[0].mxu0 %v731
      %v780 = vpop.f32.mrb[0].mxu0
      %v781 = vadd.f32 %v677, %v780
      %v782 = vpop.f32.mrb[0].mxu0
      %v783 = vadd.f32 %v677, %v782
      %v784 = vpop.f32.mrb[0].mxu0
      %v785 = vpop.f32.mrb[0].mxu0
      %786 = vdwg.mxu0
      %787 = vmatprep.subr.bf16.mxu0 %v712
      %788 = vmatpush1.bf16.msra.mxu0 %v711
      %789 = vmatprep.subr.bf16.mxu0 %v716
      %790 = vmatpush1.bf16.msra.mxu0 %v715
      %791 = vmatprep.subr.bf16.mxu0 %v744
      %792 = vmatpush1.bf16.msra.mxu0 %v741
      %793 = vmatprep.subr.bf16.mxu0 0
      %794 = vmatpush1.bf16.msra.mxu0 0
      %795 = vmatprep.subr.bf16.mxu0 0
      %796 = vmatpush1.bf16.msra.mxu0 0
      %797 = vmatprep.subr.bf16.mxu0 0
      %798 = vmatpush1.bf16.msra.mxu0 0
      %799 = vmatprep.subr.bf16.mxu0 0
      %800 = vmatpush1.bf16.msra.mxu0 0
      %801 = vmatprep.subr.bf16.mxu0 0
      %802 = vmatpush1.bf16.msra.mxu0 0
      %803 = vmatprep.subr.bf16.mxu0 0
      %804 = vmatpush1.bf16.msra.mxu0 0
      %805 = vmatprep.subr.bf16.mxu0 0
      %806 = vmatpush1.bf16.msra.mxu0 0
      %807 = vmatprep.subr.bf16.mxu0 0
      %808 = vmatpush1.bf16.msra.mxu0 0
      %809 = vmatprep.subr.bf16.mxu0 0
      %810 = vmatpush1.bf16.msra.mxu0 0
      %811 = vmatprep.subr.bf16.mxu0 0
      %812 = vmatpush1.bf16.msra.mxu0 0
      %813 = vmatprep.subr.bf16.mxu0 0
      %814 = vmatpush1.bf16.msra.mxu0 0
      %815 = vmatprep.subr.bf16.mxu0 0
      %816 = vmatpush1.bf16.msra.mxu0 0
      %817 = vmatprep.subr.bf16.mxu0 0
      %818 = vmatpush1.bf16.msra.mxu0 0
      %819 = vmatprep.mubr.bf16.mxu0 0
      %820 = vmatmul.mubr.bf16.gmra.mrb[0].mxu0 %v731
      %v821 = vpop.f32.mrb[0].mxu0
      %v822 = vadd.f32 %v677, %v821
      %v823 = vpop.f32.mrb[0].mxu0
      %v824 = vadd.f32 %v677, %v823
      %v825 = vpop.f32.mrb[0].mxu0
      %v826 = vpop.f32.mrb[0].mxu0
      %827 = vdwg.mxu0
      %v828 = vsub.f32 0.0, %v781
      %v829 = vsub.f32 0.0, %v783
      %v830 = vsub.f32 0.0, %v822
      %v831 = vsub.f32 0.0, %v824
      %v832 = vmul.f32 %v828, 1.442695
      %v833 = vpow.pop %v832
      %v834 = vmul.f32 %v829, 1.442695
      %v835 = vpow.pop %v834
      %v836 = vmul.f32 %v830, 1.442695
      %v837 = vpow.pop %v836
      %v838 = vmul.f32 %v831, 1.442695
      %v839 = vpow.pop %v838
      %v840 = vadd.f32 %v833, 1.0
      %v841 = vadd.f32 %v835, 1.0
      %v842 = vadd.f32 %v837, 1.0
      %v843 = vadd.f32 %v839, 1.0
      %v844 = vrcp.pop %v840
      %v845 = vrcp.pop %v841
      %v846 = vrcp.pop %v842
      %v847 = vrcp.pop %v843
      %v848 = vld [vmem:[%s251] sm:$0xff]
      %v849 = vld [vmem:[%s251 + $0x8] sm:$0xff]
      %v854 = vcombine.low %v844, %v845
      %v855 = vcombine.low %v846, %v847
      %856 = vrot.lane.b32.xlu0 %v854, 19
      %v857 = vpop.permute.xlu0 %856
      %858 = vrot.lane.b32.xlu0 %v855, 19
      %v859 = vpop.permute.xlu0 %858
      %v860 = vrot.slane %v857, 4
      %v861 = vrot.slane %v859, 4
      %vm862 = vcmask 154624
      %v863 = vsel %vm862, %v860, %v857
      %vm864 = vcmask 1043456
      %v865 = vsel %vm864, %v860, %v861
      %v866 = vsel %vm862, %v865, %v859
      %v869 = vmul.f32 %v848, %v863
      %v870 = vmul.f32 %v849, %v866
      %v873 = vcombine.high %v869, %v869
      %v874 = vcombine.high %v870, %v870
      %v877 = vpack.c.bf16 %v869, %v869
      %v878 = vpack.c.bf16 %v873, %v873
      %v879 = vpack.c.bf16 %v870, %v870
      %v880 = vpack.c.bf16 %v874, %v874
      %v885 = vunpack.c.l.b16 %v877
      %v886 = vunpack.c.l.b16 %v878
      %v887 = vunpack.c.l.b16 %v879
      %v888 = vunpack.c.l.b16 %v880
      %v889 = vpack.c.b16 %v886, %v885
      %v890 = vpack.c.b16 %v888, %v887
      %891 = vrot.lane.b32.xlu0 %v889, 109
      %v892 = vpop.permute.xlu0 %891
      %893 = vrot.lane.b32.xlu0 %v890, 109
      %v894 = vpop.permute.xlu0 %893
      %v895 = vrot.slane %v892, 4
      %v896 = vrot.slane %v894, 4
      %v897 = vsel %vm328, %v895, %v896
      %v898 = vsel %vm468, %v892, %v897
      %v899 = vsel %vm468, %v894, %v896
      %902 = vst [vmem:[#allocation3] sm:$0x33] %v898
      %903 = vst [vmem:[#allocation3 + $0x8] sm:$0x3] %v899
      %v904 = vrot.slane %v889, 6
      %v905 = vrot.slane %v890, 6
      %906 = vrot.lane.b32.xlu0 %v904, 108
      %v907 = vpop.permute.xlu0 %906
      %908 = vrot.lane.b32.xlu0 %v905, 108
      %v909 = vpop.permute.xlu0 %908
      %v910 = vrot.slane %v907, 4
      %v911 = vrot.slane %v909, 4
      %v912 = vsel %vm328, %v910, %v911
      %v913 = vsel %vm516, %v907, %v912
      %v914 = vsel %vm516, %v909, %v911
      %917 = vst [vmem:[#allocation3] sm:$0xcc] %v913
      %918 = vst [vmem:[#allocation3 + $0x8] sm:$0xc] %v914
      %919 = vrot.lane.b32.xlu0 %v889, 107
      %v920 = vpop.permute.xlu0 %919
      %921 = vrot.lane.b32.xlu0 %v890, 107
      %v922 = vpop.permute.xlu0 %921
      %v923 = vrot.slane %v920, 4
      %v924 = vrot.slane %v922, 4
      %v925 = vsel %vm328, %v923, %v924
      %vm926 = vcmask 875520
      %v927 = vsel %vm926, %v920, %v925
      %v928 = vsel %vm926, %v922, %v924
      %931 = vst [vmem:[#allocation3 + $0xc] sm:$0x33] %v927
      %932 = vst [vmem:[#allocation3 + $0x14] sm:$0x3] %v928
      %933 = vrot.lane.b32.xlu0 %v904, 91
      %v934 = vpop.permute.xlu0 %933
      %935 = vrot.lane.b32.xlu0 %v905, 91
      %v936 = vpop.permute.xlu0 %935
      %v937 = vrot.slane %v934, 4
      %v938 = vrot.slane %v936, 4
      %v939 = vsel %vm328, %v937, %v938
      %v940 = vsel %vm609, %v934, %v939
      %v941 = vsel %vm609, %v936, %v938
      %944 = vst [vmem:[#allocation3 + $0xc] sm:$0xcc] %v940
      %945 = vst [vmem:[#allocation3 + $0x14] sm:$0xc] %v941
      %946 = vrot.lane.b32.xlu0 %v889, 90
      %v947 = vpop.permute.xlu0 %946
      %948 = vrot.lane.b32.xlu0 %v890, 90
      %v949 = vpop.permute.xlu0 %948
      %v950 = vrot.slane %v947, 4
      %v951 = vrot.slane %v949, 4
      %v952 = vsel %vm328, %v950, %v951
      %v953 = vsel %vm654, %v947, %v952
      %v954 = vsel %vm654, %v949, %v951
      %957 = vst [vmem:[#allocation3 + $0x18] sm:$0x33] %v953
      %958 = vst [vmem:[#allocation3 + $0x20] sm:$0x3] %v954
      %959 = vrot.lane.b32.xlu0 %v904, 89
      %v960 = vpop.permute.xlu0 %959
      %961 = vrot.lane.b32.xlu0 %v905, 89
      %v962 = vpop.permute.xlu0 %961
      %v963 = vrot.slane %v960, 4
      %v964 = vrot.slane %v962, 4
      %v965 = vsel %vm328, %v963, %v964
      %vm966 = vcmask 728064
      %v967 = vsel %vm966, %v960, %v965
      %v968 = vsel %vm966, %v962, %v964
      %971 = vst [vmem:[#allocation3 + $0x18] sm:$0xcc] %v967
      %972 = vst [vmem:[#allocation3 + $0x20] sm:$0xc] %v968
      %973 = vrot.lane.b32.xlu0 %v889, 73
      %v974 = vpop.permute.xlu0 %973
      %975 = vrot.lane.b32.xlu0 %v890, 73
      %v976 = vpop.permute.xlu0 %975
      %v977 = vrot.slane %v974, 4
      %v978 = vrot.slane %v976, 4
      %v979 = vsel %vm328, %v977, %v978
      %vm980 = vcmask 596992
      %v981 = vsel %vm980, %v974, %v979
      %v982 = vsel %vm980, %v976, %v978
      %985 = vst [vmem:[#allocation3 + $0x24] sm:$0x33] %v981
      %986 = vst [vmem:[#allocation3 + $0x2c] sm:$0x3] %v982
      %987 = vrot.lane.b32.xlu0 %v904, 72
      %v988 = vpop.permute.xlu0 %987
      %989 = vrot.lane.b32.xlu0 %v905, 72
      %v990 = vpop.permute.xlu0 %989
      %v991 = vrot.slane %v988, 4
      %v992 = vrot.slane %v990, 4
      %v993 = vsel %vm328, %v991, %v992
      %vm994 = vcmask 588800
      %v995 = vsel %vm994, %v988, %v993
      %v996 = vsel %vm994, %v990, %v992
      %999 = vst [vmem:[#allocation3 + $0x24] sm:$0xcc] %v995
      %1000 = vst [vmem:[#allocation3 + $0x2c] sm:$0xc] %v996
      %1001 = vrot.lane.b32.xlu0 %v889, 71
      %v1002 = vpop.permute.xlu0 %1001
      %1003 = vrot.lane.b32.xlu0 %v890, 71
      %v1004 = vpop.permute.xlu0 %1003
      %v1005 = vrot.slane %v1002, 4
      %v1006 = vrot.slane %v1004, 4
      %v1007 = vsel %vm328, %v1005, %v1006
      %vm1008 = vcmask 580608
      %v1009 = vsel %vm1008, %v1002, %v1007
      %v1010 = vsel %vm1008, %v1004, %v1006
      %1013 = vst [vmem:[#allocation3 + $0x30] sm:$0x33] %v1009
      %1014 = vst [vmem:[#allocation3 + $0x38] sm:$0x3] %v1010
      %v1015 = vld [vmem:[%s3] sm:$0x1]
      %v1016 = vld [vmem:[#allocation3] sm:$0xff]
      %v1017 = vld [vmem:[#allocation3 + $0x8] sm:$0xf]
      %v1018 = vld [vmem:[#allocation3 + $0xc] sm:$0xff]
      %v1019 = vld [vmem:[#allocation3 + $0x14] sm:$0xf]
      %v1020 = vld [vmem:[#allocation3 + $0x18] sm:$0xff]
      %v1021 = vld [vmem:[#allocation3 + $0x20] sm:$0xf]
      %v1022 = vld [vmem:[#allocation3 + $0x24] sm:$0xff]
      %v1023 = vld [vmem:[#allocation3 + $0x2c] sm:$0xf]
      %v1024 = vld [vmem:[#allocation3 + $0x30] sm:$0x33]
      %v1025 = vld [vmem:[#allocation3 + $0x38] sm:$0x3]
      %v1026 = vld [vmem:[%s4] sm:$0x3]
      %1028 = vset.pattern.permute.xlu0 0
      %1029 = vperm.xlu0 %1028, %v1026
      %v1030 = vpop.permute.xlu0 %1029
      %v1042 = vunpack.c.l.b16 %v1016
      %v1043 = vunpack.c.h.b16 %v1016
      %v1044 = vunpack.c.l.b16 %v1017
      %v1045 = vunpack.c.l.b16 %v1018
      %v1046 = vunpack.c.h.b16 %v1018
      %v1047 = vunpack.c.l.b16 %v1019
      %v1048 = vunpack.c.l.b16 %v1020
      %v1049 = vunpack.c.h.b16 %v1020
      %v1050 = vunpack.c.l.b16 %v1021
      %v1051 = vunpack.c.l.b16 %v1022
      %v1052 = vunpack.c.h.b16 %v1022
      %v1053 = vunpack.c.l.b16 %v1023
      %v1054 = vunpack.c.l.b16 %v1024
      %v1055 = vunpack.c.h.b16 %v1024
      %v1056 = vunpack.c.l.b16 %v1025
      %v1057 = vpack.c.b16 %v1045, %v1042
      %v1058 = vpack.c.b16 %v1046, %v1043
      %v1059 = vpack.c.b16 %v1047, %v1044
      %v1060 = vpack.c.b16 %v1051, %v1048
      %v1061 = vpack.c.b16 %v1052, %v1049
      %v1062 = vpack.c.b16 %v1053, %v1050
      %v1063 = vpack.c.b16 %v1054, %v1054
      %v1064 = vpack.c.b16 %v1055, %v1055
      %v1065 = vpack.c.b16 %v1056, %v1056
      %v1073 = vsel %vm729, %v1015, 0
      %v1076 = vsel %vm733, %v1063, 0
      %v1079 = vsel %vm733, %v1064, 0
      %v1082 = vsel %vm733, %v1065, 0
      %1084 = vmatprep.subr.bf16.mxu0 %v1058
      %1085 = vmatpush1.bf16.msra.mxu0 %v1057
      %1086 = vmatprep.subr.bf16.mxu0 %v1061
      %1087 = vmatpush1.bf16.msra.mxu0 %v1060
      %1088 = vmatprep.subr.bf16.mxu0 %v1079
      %1089 = vmatpush1.bf16.msra.mxu0 %v1076
      %1090 = vmatprep.subr.bf16.mxu0 0
      %1091 = vmatpush1.bf16.msra.mxu0 0
      %1092 = vmatprep.subr.bf16.mxu0 0
      %1093 = vmatpush1.bf16.msra.mxu0 0
      %1094 = vmatprep.subr.bf16.mxu0 0
      %1095 = vmatpush1.bf16.msra.mxu0 0
      %1096 = vmatprep.subr.bf16.mxu0 0
      %1097 = vmatpush1.bf16.msra.mxu0 0
      %1098 = vmatprep.subr.bf16.mxu0 0
      %1099 = vmatpush1.bf16.msra.mxu0 0
      %1100 = vmatprep.subr.bf16.mxu0 0
      %1101 = vmatpush1.bf16.msra.mxu0 0
      %1102 = vmatprep.subr.bf16.mxu0 0
      %1103 = vmatpush1.bf16.msra.mxu0 0
      %1104 = vmatprep.subr.bf16.mxu0 0
      %1105 = vmatpush1.bf16.msra.mxu0 0
      %1106 = vmatprep.subr.bf16.mxu0 0
      %1107 = vmatpush1.bf16.msra.mxu0 0
      %1108 = vmatprep.subr.bf16.mxu0 0
      %1109 = vmatpush1.bf16.msra.mxu0 0
      %1110 = vmatprep.subr.bf16.mxu0 0
      %1111 = vmatpush1.bf16.msra.mxu0 0
      %1112 = vmatprep.subr.bf16.mxu0 0
      %1113 = vmatpush1.bf16.msra.mxu0 0
      %1114 = vmatprep.subr.bf16.mxu0 0
      %1115 = vmatpush1.bf16.msra.mxu0 0
      %1116 = vmatprep.mubr.bf16.mxu0 0
      %1117 = vmatmul.mubr.bf16.gmra.mrb[0].mxu0 %v1073
      %v1118 = vpop.f32.mrb[0].mxu0
      %v1119 = vadd.f32 %v1030, %v1118
      %v1120 = vpop.f32.mrb[0].mxu0
      %v1121 = vadd.f32 %v1030, %v1120
      %v1122 = vpop.f32.mrb[0].mxu0
      %v1123 = vpop.f32.mrb[0].mxu0
      %1124 = vdwg.mxu0
      %1125 = vmatprep.subr.bf16.mxu0 0
      %1126 = vmatpush1.bf16.msra.mxu0 %v1059
      %1127 = vmatprep.subr.bf16.mxu0 0
      %1128 = vmatpush1.bf16.msra.mxu0 %v1062
      %1129 = vmatprep.subr.bf16.mxu0 0
      %1130 = vmatpush1.bf16.msra.mxu0 %v1082
      %1131 = vmatprep.subr.bf16.mxu0 0
      %1132 = vmatpush1.bf16.msra.mxu0 0
      %1133 = vmatprep.subr.bf16.mxu0 0
      %1134 = vmatpush1.bf16.msra.mxu0 0
      %1135 = vmatprep.subr.bf16.mxu0 0
      %1136 = vmatpush1.bf16.msra.mxu0 0
      %1137 = vmatprep.subr.bf16.mxu0 0
      %1138 = vmatpush1.bf16.msra.mxu0 0
      %1139 = vmatprep.subr.bf16.mxu0 0
      %1140 = vmatpush1.bf16.msra.mxu0 0
      %1141 = vmatprep.subr.bf16.mxu0 0
      %1142 = vmatpush1.bf16.msra.mxu0 0
      %1143 = vmatprep.subr.bf16.mxu0 0
      %1144 = vmatpush1.bf16.msra.mxu0 0
      %1145 = vmatprep.subr.bf16.mxu0 0
      %1146 = vmatpush1.bf16.msra.mxu0 0
      %1147 = vmatprep.subr.bf16.mxu0 0
      %1148 = vmatpush1.bf16.msra.mxu0 0
      %1149 = vmatprep.subr.bf16.mxu0 0
      %1150 = vmatpush1.bf16.msra.mxu0 0
      %1151 = vmatprep.subr.bf16.mxu0 0
      %1152 = vmatpush1.bf16.msra.mxu0 0
      %1153 = vmatprep.subr.bf16.mxu0 0
      %1154 = vmatpush1.bf16.msra.mxu0 0
      %1155 = vmatprep.subr.bf16.mxu0 0
      %1156 = vmatpush1.bf16.msra.mxu0 0
      %1157 = vmatprep.mubr.bf16.mxu0 0
      %1158 = vmatmul.mubr.bf16.gmra.mrb[0].mxu0 %v1073
      %v1159 = vpop.f32.mrb[0].mxu0
      %v1160 = vadd.f32 %v1030, %v1159
      %v1161 = vpop.f32.mrb[0].mxu0
      %v1162 = vpop.f32.mrb[0].mxu0
      %v1163 = vpop.f32.mrb[0].mxu0
      %1164 = vdwg.mxu0
      %v1165 = vmax.f32 %v1119, 0.0
      %v1166 = vmax.f32 %v1121, 0.0
      %v1167 = vmax.f32 %v1160, 0.0
      %v1168 = vmin.f32 %v1165, 6.0
      %v1169 = vmin.f32 %v1166, 6.0
      %v1170 = vmin.f32 %v1167, 6.0
      %v1174 = vcombine.low %v1168, %v1169
      %v1176 = vunpack.c.l.s4 1983009808
      %v1177 = vunpack.c.0.s8 %v1176
      %v1178 = vlaneseq
      %v1179 = vshrl.u32 %v1178, 7
      %v1180 = vsub.s32 %v1177, %v1179
      %v1181 = vrot.slane %v1174, %v1180
      %v1183 = vunpack.c.l.s4 1983009808
      %v1184 = vunpack.c.0.s8 %v1183
      %v1185 = vlaneseq
      %v1186 = vshrl.u32 %v1185, 7
      %v1187 = vsub.s32 %v1184, %v1186
      %v1188 = vrot.slane %v1170, %v1187
      %v1189 = vcombine.low %v1181, %v1188
      %1191 = vst [vmem:[%s260] sm:$0x3f] %v1189
      %s1192 = smul.u32 3, %s21
      %p1193 = scmp.lt.s32.totalorder %s20, 1
      %s1194 = scalar_select %p1193, %s20, 1
      %p1195 = scmp.lt.s32.totalorder %s1192, 2
      %s1196 = scalar_select %p1195, %s1192, 2
      %s1197 = smul.addr %s1194, 3
      %s1198 = sadd.s32 %s1196, %s1197
      %s1199 = smul.addr %s1198, 2
      %s1200 = scalar_lea.vmem %s5, %s1199
      // Predicated region
      $region41: #{_lambda_.1} parent=39 // pred_check
        %p1201 = pneg %p160
      $region42: #{_lambda_.1} parent=39 // pred_check_branch
        %1203 = sbr.rel (%p1201) target = $region44
      $region43: #{_lambda_.1} parent=39 // pred_region
        %s1204 = smul.u32 3, %s21
      $region44: #{_lambda_.1} parent=39 // pred_fallthru
        _
    $region40: #{_lambda_.1} parent=5 // pred_fallthru
      _
    %p1205 = scmp.le.s32.totalorder 2, %s11
    // Predicated region
    $region45: #{_lambda_.1} parent=5 // pred_check
      %p1206 = pneg %p1205
    $region46: #{_lambda_.1} parent=5 // pred_check_branch
      %1208 = sbr.rel (%p1206) target = $region48
    $region47: #{_lambda_.1} parent=5 // pred_region
      %s1209 = ssub.s32 %s11, 2
      // Predicated region
      $region49: #{_lambda_.1} parent=47 // pred_check
        %p1210 = pneg %p166
      $region50: #{_lambda_.1} parent=47 // pred_check_branch
        %1212 = sbr.rel (%p1210) target = $region52
      $region51: #{_lambda_.1} parent=47 // pred_region
        %s1213 = smul.u32 3, %s23
        %p1214 = scmp.lt.s32.totalorder %s22, 1
        %s1215 = scalar_select %p1214, %s22, 1
        %p1216 = scmp.lt.s32.totalorder %s1213, 2
        %s1217 = scalar_select %p1216, %s1213, 2
        %s1218 = smul.addr %s1215, 3
        %s1219 = sadd.s32 %s1217, %s1218
        %s1220 = smul.addr %s1219, 2
        %s1221 = scalar_lea.vmem %s5, %s1220
      $region52: #{_lambda_.1} parent=47 // pred_fallthru
        _
    $region48: #{_lambda_.1} parent=5 // pred_fallthru
      _
  $region6: #{_lambda_.1} parent=0 // loop_footer
    %s15 = sadd.s32 1, %s11
  $region7: #{_lambda_.1} parent=0 // loop_footer_branch
    %10 = sbr.rel target = $region3
  $region8: #{_lambda_.1} parent=0 // loop_exit
    _

</llo_original>
